<compile_context>
chip_gen: v6e
topology: v6e:2x2x1
jax: 0.10.0
libtpu: 0.0.40
codegen_flags: <defaults>
</compile_context>

<pallas_src>
import jax
import jax.numpy as jnp
from jax.experimental import pallas as pl
from jax.experimental.pallas import tpu as pltpu

HIDDEN = 128
LOG_STD_MIN = -20.0
LOG_STD_MAX = 2.0
NEG_SLOPE = 0.01  # F.leaky_relu default


def _leaky_relu(x):
    return jnp.where(x > 0, x, NEG_SLOPE * x)


def _round_up(n, m):
    return ((n + m - 1) // m) * m


def policy_kernel(x_ref, w1_ref, b1_ref, w2_ref, b2_ref, wh_ref, bh_ref, out_ref):
    # x tile arrives f32; cast to bf16 in-kernel (free VPU work) so the MXU
    # runs bf16 operands with f32 accumulation throughout.
    x = x_ref[...].astype(jnp.bfloat16)

    h = jnp.dot(x, w1_ref[...], preferred_element_type=jnp.float32) + b1_ref[...]
    h = _leaky_relu(h).astype(jnp.bfloat16)

    h = jnp.dot(h, w2_ref[...], preferred_element_type=jnp.float32) + b2_ref[...]
    h = _leaky_relu(h).astype(jnp.bfloat16)

    # Fused + lane-padded heads: one (TB, 128) matmul, one dense unmasked store.
    heads = jnp.dot(h, wh_ref[...], preferred_element_type=jnp.float32) + bh_ref[...]
    out_ref[...] = heads.astype(out_ref.dtype)


def prepare_params(params):
    """One-time prep: fuse the two heads, pad them to 128 lanes, cast matmul
    weights to bf16."""
    wheads = jnp.concatenate([params["wmu"], params["wstd"]], axis=1)
    bheads = jnp.concatenate([params["bmu"], params["bstd"]], axis=1)
    two_a = wheads.shape[1]
    out_w = _round_up(max(two_a, 128), 128)        # lane-dense head output
    wheads = jnp.pad(wheads, ((0, 0), (0, out_w - two_a)))
    bheads = jnp.pad(bheads, ((0, 0), (0, out_w - two_a)))
    return dict(
        w1=params["w1"].astype(jnp.bfloat16),
        b1=params["b1"].astype(jnp.float32),
        w2=params["w2"].astype(jnp.bfloat16),
        b2=params["b2"].astype(jnp.float32),
        wheads=wheads.astype(jnp.bfloat16),
        bheads=bheads.astype(jnp.float32),
        action_dim=two_a // 2,
    )


def _default_num_steps():
    """2 grid steps on v7x (feed both TensorCores); 1 elsewhere (v5e/v6e are
    single-TC, so extra steps are pure per-step overhead)."""
    try:
        kind = jax.devices()[0].device_kind.lower()
    except Exception:
        return 1
    return 2 if "v7" in kind else 1


def _choose_tile(batch, num_steps, max_tile=1024):
    per_step = _round_up(pl.cdiv(batch, num_steps), 8)
    tb = min(max_tile, per_step)
    bp = _round_up(batch, tb)
    return tb, bp


def policy_forward(x, prep, *, num_steps=None, max_tile=1024):
    """PolicyNetwork.forward hot path in one batch-tiled Pallas kernel."""
    B, S = x.shape
    A = prep["action_dim"]
    OUT_W = prep["wheads"].shape[1]

    if num_steps is None:
        num_steps = _default_num_steps()
    TB, Bp = _choose_tile(B, num_steps, max_tile)

    xp = x if Bp == B else jnp.pad(x, ((0, Bp - B), (0, 0)))
    grid = (Bp // TB,)

    fused = pl.pallas_call(
        policy_kernel,
        out_shape=jax.ShapeDtypeStruct((Bp, OUT_W), jnp.float32),
        grid_spec=pltpu.PrefetchScalarGridSpec(
            num_scalar_prefetch=0,
            grid=grid,
            in_specs=[
                pl.BlockSpec((TB, S), lambda i: (i, 0)),            # x tile
                pl.BlockSpec((S, HIDDEN), lambda i: (0, 0)),        # W1 (resident)
                pl.BlockSpec((1, HIDDEN), lambda i: (0, 0)),        # b1
                pl.BlockSpec((HIDDEN, HIDDEN), lambda i: (0, 0)),   # W2
                pl.BlockSpec((1, HIDDEN), lambda i: (0, 0)),        # b2
                pl.BlockSpec((HIDDEN, OUT_W), lambda i: (0, 0)),    # W_heads (padded)
                pl.BlockSpec((1, OUT_W), lambda i: (0, 0)),         # b_heads (padded)
            ],
            out_specs=pl.BlockSpec((TB, OUT_W), lambda i: (i, 0)),
        ),
        compiler_params=pltpu.CompilerParams(
            dimension_semantics=("parallel",)),
    )(xp, prep["w1"], prep["b1"], prep["w2"], prep["b2"],
      prep["wheads"], prep["bheads"])

    mu = fused[:B, :A]
    # Clamp only the log_std slice in the wrapper (fuses with the slice).
    log_std = jnp.clip(fused[:B, A:2 * A], LOG_STD_MIN, LOG_STD_MAX)
    return mu, log_std


def init_params(key, state_dim, action_dim):
    """Deterministic synthetic init (shapes match nn.Linear layers, transposed)."""
    ks = jax.random.split(key, 8)

    def lin(kw, kb, fan_in, fan_out):
        bound = 1.0 / jnp.sqrt(float(fan_in))
        w = jax.random.uniform(kw, (fan_in, fan_out), jnp.float32, -bound, bound)
        b = jax.random.uniform(kb, (1, fan_out), jnp.float32, -bound, bound)
        return w, b

    w1, b1 = lin(ks[0], ks[1], state_dim, HIDDEN)
    w2, b2 = lin(ks[2], ks[3], HIDDEN, HIDDEN)
    wmu, bmu = lin(ks[4], ks[5], HIDDEN, action_dim)
    wstd, bstd = lin(ks[6], ks[7], HIDDEN, action_dim)
    return dict(w1=w1, b1=b1, w2=w2, b2=b2,
                wmu=wmu, bmu=bmu, wstd=wstd, bstd=bstd)


def reference_forward_bf16(x, prep):
    """Pure-JAX reference mimicking the kernel's bf16-operand / f32-accum math."""
    A = prep["action_dim"]
    xb = x.astype(jnp.bfloat16)
    h = jnp.dot(xb, prep["w1"], preferred_element_type=jnp.float32) + prep["b1"]
    h = _leaky_relu(h).astype(jnp.bfloat16)
    h = jnp.dot(h, prep["w2"], preferred_element_type=jnp.float32) + prep["b2"]
    h = _leaky_relu(h).astype(jnp.bfloat16)
    heads = jnp.dot(h, prep["wheads"], preferred_element_type=jnp.float32) + prep["bheads"]
    mu = heads[:, :A]
    ls = jnp.clip(heads[:, A:2 * A], LOG_STD_MIN, LOG_STD_MAX)
    return mu, ls


def reference_forward_f32(x, p):
    """Full-precision reference matching the PyTorch module exactly."""
    h = _leaky_relu(x @ p["w1"] + p["b1"])
    h = _leaky_relu(h @ p["w2"] + p["b2"])
    mu = h @ p["wmu"] + p["bmu"]
    ls = jnp.clip(h @ p["wstd"] + p["bstd"], LOG_STD_MIN, LOG_STD_MAX)
    return mu, ls


if __name__ == "__main__":
    key = jax.random.PRNGKey(0)
    k_x, k_p = jax.random.split(key)

    batch = 100          # not a multiple of the batch tile -> exercises tail padding
    state_dim = 8
    action_dim = 4

    x = jax.random.normal(k_x, (batch, state_dim), jnp.float32)
    params = init_params(k_p, state_dim, action_dim)
    prep = prepare_params(params)

    mu, log_std = policy_forward(x, prep)
    jax.block_until_ready((mu, log_std))

    assert mu.shape == (batch, action_dim)
    assert log_std.shape == (batch, action_dim)

    # Tight check vs. a reference that uses the same bf16-operand math.
    mu_b, ls_b = reference_forward_bf16(x, prep)
    assert jnp.allclose(mu, mu_b, atol=2e-3, rtol=2e-3)
    assert jnp.allclose(log_std, ls_b, atol=2e-3, rtol=2e-3)

    # Loose check vs. the full f32 PyTorch-equivalent forward (bf16 rounding only).
    mu_f, ls_f = reference_forward_f32(x, params)
    assert jnp.allclose(mu, mu_f, atol=5e-2, rtol=5e-2)
    assert jnp.allclose(log_std, ls_f, atol=5e-2, rtol=5e-2)

    print("KERNEL_OK")
</pallas_src>

<mosaic_0001>
module attributes {stable_mosaic.version = 11 : i64} {
  func.func @policy_kernel(%arg0: i32, %arg1: memref<104x8xf32, #tpu.memory_space<vmem>>, %arg2: memref<8x128xbf16, #tpu.memory_space<vmem>>, %arg3: memref<1x128xf32, #tpu.memory_space<vmem>>, %arg4: memref<128x128xbf16, #tpu.memory_space<vmem>>, %arg5: memref<1x128xf32, #tpu.memory_space<vmem>>, %arg6: memref<128x128xbf16, #tpu.memory_space<vmem>>, %arg7: memref<1x128xf32, #tpu.memory_space<vmem>>, %arg8: memref<104x128xf32, #tpu.memory_space<vmem>>) attributes {dimension_semantics = [#tpu.dimension_semantics<parallel>], iteration_bounds = array<i64: 1>, scalar_prefetch = 0 : i64, scratch_operands = 0 : i64, tpu.core_type = #tpu.core_type<tc>, window_params = [{transform_indices = @transform_0, window_bounds = array<i64: 104, 8>}, {pipeline_mode = #tpu.pipeline_mode<synchronous>, transform_indices = @transform_1, window_bounds = array<i64: 8, 128>}, {pipeline_mode = #tpu.pipeline_mode<synchronous>, transform_indices = @transform_2, window_bounds = array<i64: 1, 128>}, {pipeline_mode = #tpu.pipeline_mode<synchronous>, transform_indices = @transform_3, window_bounds = array<i64: 128, 128>}, {pipeline_mode = #tpu.pipeline_mode<synchronous>, transform_indices = @transform_4, window_bounds = array<i64: 1, 128>}, {pipeline_mode = #tpu.pipeline_mode<synchronous>, transform_indices = @transform_5, window_bounds = array<i64: 128, 128>}, {pipeline_mode = #tpu.pipeline_mode<synchronous>, transform_indices = @transform_6, window_bounds = array<i64: 1, 128>}, {transform_indices = @transform_7, window_bounds = array<i64: 104, 128>}]} {
    %c0 = arith.constant 0 : index
    %c0_0 = arith.constant 0 : index
    %0 = vector.load %arg1[%c0, %c0_0] : memref<104x8xf32, #tpu.memory_space<vmem>>, vector<104x8xf32>
    %1 = arith.truncf %0 : vector<104x8xf32> to vector<104x8xbf16>
    %c0_1 = arith.constant 0 : index
    %c0_2 = arith.constant 0 : index
    %2 = vector.load %arg2[%c0_1, %c0_2] : memref<8x128xbf16, #tpu.memory_space<vmem>>, vector<8x128xbf16>
    %cst = arith.constant dense<0.000000e+00> : vector<104x128xf32>
    %3 = tpu.matmul %1, %2, %cst {dimension_numbers = #tpu.dot_dimension_numbers<[1], [0], [0], [1], [0, 0, 1, 1], [], []>} : vector<104x8xbf16>, vector<8x128xbf16>, vector<104x128xf32> -> vector<104x128xf32>
    %c0_3 = arith.constant 0 : index
    %c0_4 = arith.constant 0 : index
    %4 = vector.load %arg3[%c0_3, %c0_4] : memref<1x128xf32, #tpu.memory_space<vmem>>, vector<1x128xf32>
    %5 = vector.broadcast %4 : vector<1x128xf32> to vector<104x128xf32>
    %6 = arith.addf %3, %5 : vector<104x128xf32>
    %cst_5 = arith.constant 0.000000e+00 : f32
    %7 = vector.broadcast %cst_5 : f32 to vector<104x128xf32>
    %8 = arith.cmpf ogt, %6, %7 : vector<104x128xf32>
    %cst_6 = arith.constant 0.00999999977 : f32
    %9 = vector.broadcast %cst_6 : f32 to vector<104x128xf32>
    %10 = arith.mulf %9, %6 : vector<104x128xf32>
    %11 = arith.select %8, %6, %10 : vector<104x128xi1>, vector<104x128xf32>
    %12 = arith.truncf %11 : vector<104x128xf32> to vector<104x128xbf16>
    %c0_7 = arith.constant 0 : index
    %c0_8 = arith.constant 0 : index
    %13 = vector.load %arg4[%c0_7, %c0_8] : memref<128x128xbf16, #tpu.memory_space<vmem>>, vector<128x128xbf16>
    %cst_9 = arith.constant dense<0.000000e+00> : vector<104x128xf32>
    %14 = tpu.matmul %12, %13, %cst_9 {dimension_numbers = #tpu.dot_dimension_numbers<[1], [0], [0], [1], [0, 0, 1, 1], [], []>} : vector<104x128xbf16>, vector<128x128xbf16>, vector<104x128xf32> -> vector<104x128xf32>
    %c0_10 = arith.constant 0 : index
    %c0_11 = arith.constant 0 : index
    %15 = vector.load %arg5[%c0_10, %c0_11] : memref<1x128xf32, #tpu.memory_space<vmem>>, vector<1x128xf32>
    %16 = vector.broadcast %15 : vector<1x128xf32> to vector<104x128xf32>
    %17 = arith.addf %14, %16 : vector<104x128xf32>
    %cst_12 = arith.constant 0.000000e+00 : f32
    %18 = vector.broadcast %cst_12 : f32 to vector<104x128xf32>
    %19 = arith.cmpf ogt, %17, %18 : vector<104x128xf32>
    %cst_13 = arith.constant 0.00999999977 : f32
    %20 = vector.broadcast %cst_13 : f32 to vector<104x128xf32>
    %21 = arith.mulf %20, %17 : vector<104x128xf32>
    %22 = arith.select %19, %17, %21 : vector<104x128xi1>, vector<104x128xf32>
    %23 = arith.truncf %22 : vector<104x128xf32> to vector<104x128xbf16>
    %c0_14 = arith.constant 0 : index
    %c0_15 = arith.constant 0 : index
    %24 = vector.load %arg6[%c0_14, %c0_15] : memref<128x128xbf16, #tpu.memory_space<vmem>>, vector<128x128xbf16>
    %cst_16 = arith.constant dense<0.000000e+00> : vector<104x128xf32>
    %25 = tpu.matmul %23, %24, %cst_16 {dimension_numbers = #tpu.dot_dimension_numbers<[1], [0], [0], [1], [0, 0, 1, 1], [], []>} : vector<104x128xbf16>, vector<128x128xbf16>, vector<104x128xf32> -> vector<104x128xf32>
    %c0_17 = arith.constant 0 : index
    %c0_18 = arith.constant 0 : index
    %26 = vector.load %arg7[%c0_17, %c0_18] : memref<1x128xf32, #tpu.memory_space<vmem>>, vector<1x128xf32>
    %27 = vector.broadcast %26 : vector<1x128xf32> to vector<104x128xf32>
    %28 = arith.addf %25, %27 : vector<104x128xf32>
    %c0_19 = arith.constant 0 : index
    %c0_20 = arith.constant 0 : index
    %29 = vector.load %arg8[%c0_19, %c0_20] : memref<104x128xf32, #tpu.memory_space<vmem>>, vector<104x128xf32>
    tpu.vector_store %arg8[%c0_19, %c0_20], %28 {strides = array<i32>} : memref<104x128xf32, #tpu.memory_space<vmem>>, vector<104x128xf32>,
    return
  }
  func.func @transform_0(%arg0: i32) -> (i32, i32) {
    %c0_i32 = arith.constant 0 : i32
    %c0_i32_0 = arith.constant 0 : i32
    return %arg0, %c0_i32 : i32, i32
  }
  func.func @transform_1(%arg0: i32) -> (i32, i32) {
    %c0_i32 = arith.constant 0 : i32
    %c0_i32_0 = arith.constant 0 : i32
    %c0_i32_1 = arith.constant 0 : i32
    return %c0_i32, %c0_i32_0 : i32, i32
  }
  func.func @transform_2(%arg0: i32) -> (i32, i32) {
    %c0_i32 = arith.constant 0 : i32
    %c0_i32_0 = arith.constant 0 : i32
    %c0_i32_1 = arith.constant 0 : i32
    return %c0_i32, %c0_i32_0 : i32, i32
  }
  func.func @transform_3(%arg0: i32) -> (i32, i32) {
    %c0_i32 = arith.constant 0 : i32
    %c0_i32_0 = arith.constant 0 : i32
    %c0_i32_1 = arith.constant 0 : i32
    return %c0_i32, %c0_i32_0 : i32, i32
  }
  func.func @transform_4(%arg0: i32) -> (i32, i32) {
    %c0_i32 = arith.constant 0 : i32
    %c0_i32_0 = arith.constant 0 : i32
    %c0_i32_1 = arith.constant 0 : i32
    return %c0_i32, %c0_i32_0 : i32, i32
  }
  func.func @transform_5(%arg0: i32) -> (i32, i32) {
    %c0_i32 = arith.constant 0 : i32
    %c0_i32_0 = arith.constant 0 : i32
    %c0_i32_1 = arith.constant 0 : i32
    return %c0_i32, %c0_i32_0 : i32, i32
  }
  func.func @transform_6(%arg0: i32) -> (i32, i32) {
    %c0_i32 = arith.constant 0 : i32
    %c0_i32_0 = arith.constant 0 : i32
    %c0_i32_1 = arith.constant 0 : i32
    return %c0_i32, %c0_i32_0 : i32, i32
  }
  func.func @transform_7(%arg0: i32) -> (i32, i32) {
    %c0_i32 = arith.constant 0 : i32
    %c0_i32_0 = arith.constant 0 : i32
    return %arg0, %c0_i32 : i32, i32
  }
}

</mosaic_0001>

<llo_original>
// kernel: tpu_custom_call.1
$region0: #{tpu_custom_call.1}
  #allocation0 [shape = 'u32[]', space=smem, size = 0x4, offset = 0x4, fixed_abs, tag = 'smem constant byte address 0x4 - core index']
  #allocation1 [shape = 'u32[144,128]{1,0:T(1,128)}', space=vmem, size = 0x12000, scoped, tag = 'internal scratch']
  %s0 = inlined_call_operand.vmem [shape: f32[104,8], index: 0, kind: input, shape index: {}]
  %s1 = inlined_call_operand.vmem [shape: bf16[8,128], index: 1, kind: input, shape index: {}]
  %s2 = inlined_call_operand.vmem [shape: f32[1,128], index: 2, kind: input, shape index: {}]
  %s3 = inlined_call_operand.vmem [shape: bf16[128,128], index: 3, kind: input, shape index: {}]
  %s4 = inlined_call_operand.vmem [shape: f32[1,128], index: 4, kind: input, shape index: {}]
  %s5 = inlined_call_operand.hbm [shape: bf16[128,128], index: 5, kind: input, shape index: {}]
  %s6 = inlined_call_operand.vmem [shape: f32[1,128], index: 6, kind: input, shape index: {}]
  %s7 = inlined_call_operand.hbm [shape: f32[104,128], index: 7, kind: output, shape index: {}]
  %s8 = sld [smem:[#allocation0]]
  $region42: #{tpu_custom_call.1} parent=0
    _
  %s10 = ssub.s32 1, %s8
  %s11 = scalar_select 0, %s10, %s8
  $region1: #{tpu_custom_call.1} parent=0
    #allocation2 [shape = 'u8[32768]{0}', space=vmem, size = 0x8000, scoped, tag = 'input window, operand 5, single buffered']
    #allocation3 [shape = 's32[1]{0}', space=sflag, size = 0x4, scoped, tag = 'scoped memory for tpu_custom_call.1']
    #allocation4 [shape = 's32[1]{0}', space=sflag, size = 0x4, scoped, tag = 'scoped memory for tpu_custom_call.1']
    #allocation5 [shape = 'u8[53248]{0}', space=vmem, size = 0xd000, scoped, tag = 'output window, operand 0, single buffered']
    %12 = vsyncpa [#allocation3], 0
    %13 = vsyncpa [#allocation4], 0
    // Predicated region
    $region2: #{tpu_custom_call.1} parent=1 // pred_check
      _
    $region3: #{tpu_custom_call.1} parent=1 // pred_check_branch
      %15 = sbr.rel (0) target = $region5
    $region4: #{tpu_custom_call.1} parent=1 // pred_region
      _
    $region5: #{tpu_custom_call.1} parent=1 // pred_fallthru
      _
    // Predicated region
    $region6: #{tpu_custom_call.1} parent=1 // pred_check
      _
    $region7: #{tpu_custom_call.1} parent=1 // pred_check_branch
      %17 = sbr.rel (0) target = $region9
    $region8: #{tpu_custom_call.1} parent=1 // pred_region
      _
    $region9: #{tpu_custom_call.1} parent=1 // pred_fallthru
      _
    // Predicated region
    $region10: #{tpu_custom_call.1} parent=1 // pred_check
      _
    $region11: #{tpu_custom_call.1} parent=1 // pred_check_branch
      %19 = sbr.rel (0) target = $region13
    $region12: #{tpu_custom_call.1} parent=1 // pred_region
      _
    $region13: #{tpu_custom_call.1} parent=1 // pred_fallthru
      _
    // Predicated region
    $region14: #{tpu_custom_call.1} parent=1 // pred_check
      _
    $region15: #{tpu_custom_call.1} parent=1 // pred_check_branch
      %21 = sbr.rel (0) target = $region17
    $region16: #{tpu_custom_call.1} parent=1 // pred_region
      _
    $region17: #{tpu_custom_call.1} parent=1 // pred_fallthru
      _
    // Predicated region
    $region18: #{tpu_custom_call.1} parent=1 // pred_check
      _
    $region19: #{tpu_custom_call.1} parent=1 // pred_check_branch
      %23 = sbr.rel (0) target = $region21
    $region20: #{tpu_custom_call.1} parent=1 // pred_region
      _
    $region21: #{tpu_custom_call.1} parent=1 // pred_fallthru
      _
    // Predicated region
    $region22: #{tpu_custom_call.1} parent=1 // pred_check
      _
    $region23: #{tpu_custom_call.1} parent=1 // pred_check_branch
      %25 = sbr.rel (0) target = $region25
    $region24: #{tpu_custom_call.1} parent=1 // pred_region
      %s27 = ssub.s32 1024, 1024
      %28 = vsyncadd [#allocation3], %s27
      %s29 = sshll.u32 [#allocation2], 4
      %s30 = int_to_ptr.vmem [resolvable:$true] %s29
      %35 = dma.hbm_to_vmem [thread:$0]  %s5, 1024, %s30, [#allocation3], 64, 64, 4
    $region25: #{tpu_custom_call.1} parent=1 // pred_fallthru
      _
    // Predicated region
    $region26: #{tpu_custom_call.1} parent=1 // pred_check
      _
    $region27: #{tpu_custom_call.1} parent=1 // pred_check_branch
      %37 = sbr.rel (0) target = $region29
    $region28: #{tpu_custom_call.1} parent=1 // pred_region
      _
    $region29: #{tpu_custom_call.1} parent=1 // pred_fallthru
      _
    // Predicated region
    $region30: #{tpu_custom_call.1} parent=1 // pred_check
      _
    $region31: #{tpu_custom_call.1} parent=1 // pred_check_branch
      %39 = sbr.rel (0) target = $region33
    $region32: #{tpu_custom_call.1} parent=1 // pred_region
      %40 = dma.done [#allocation3], 1024
    $region33: #{tpu_custom_call.1} parent=1 // pred_fallthru
      _
    %v42 = vld [vmem:[%s0] sm:$0xff]
    %v43 = vld [vmem:[%s0 + $0x8] sm:$0xff]
    %v44 = vld [vmem:[%s0 + $0x10] sm:$0xff]
    %v45 = vld [vmem:[%s0 + $0x18] sm:$0xff]
    %v46 = vld [vmem:[%s0 + $0x20] sm:$0xff]
    %v47 = vld [vmem:[%s0 + $0x28] sm:$0xff]
    %v48 = vld [vmem:[%s0 + $0x30] sm:$0xff]
    %v49 = vld [vmem:[%s0 + $0x38] sm:$0xff]
    %v50 = vld [vmem:[%s0 + $0x40] sm:$0xff]
    %v51 = vld [vmem:[%s0 + $0x48] sm:$0xff]
    %v52 = vld [vmem:[%s0 + $0x50] sm:$0xff]
    %v53 = vld [vmem:[%s0 + $0x58] sm:$0xff]
    %v54 = vld [vmem:[%s0 + $0x60] sm:$0xff]
    %v55 = vpack.c.bf16 %v43, %v42
    %v56 = vpack.c.bf16 %v45, %v44
    %v57 = vpack.c.bf16 %v47, %v46
    %v58 = vpack.c.bf16 %v49, %v48
    %v59 = vpack.c.bf16 %v51, %v50
    %v60 = vpack.c.bf16 %v53, %v52
    %v61 = vpack.c.bf16 %v54, %v54
    %v62 = vld [vmem:[%s1] sm:$0xf]
    %v63 = vld [vmem:[%s2] sm:$0x1]
    %v65 = vlaneseq
    %v66 = vshrl.u32 %v65, 7
    %v67 = vsub.s32 0, %v66
    %v68 = vrot.slane %v63, %v67
    %vm70 = vcmask 64512
    %v72 = vsel %vm70, %v55, 0
    %v75 = vsel %vm70, %v56, 0
    %v78 = vsel %vm70, %v57, 0
    %v81 = vsel %vm70, %v58, 0
    %v84 = vsel %vm70, %v59, 0
    %v87 = vsel %vm70, %v60, 0
    %v90 = vsel %vm70, %v61, 0
    %vm92 = vcmask 1043456
    %v94 = vsel %vm92, %v62, 0
    %96 = vmatprep.subr.bf16.mxu0 0
    %97 = vmatpush1.bf16.msra.mxu0 0
    %98 = vmatprep.subr.bf16.mxu0 0
    %99 = vmatpush1.bf16.msra.mxu0 0
    %100 = vmatprep.subr.bf16.mxu0 0
    %101 = vmatpush1.bf16.msra.mxu0 0
    %102 = vmatprep.subr.bf16.mxu0 0
    %103 = vmatpush1.bf16.msra.mxu0 0
    %104 = vmatprep.subr.bf16.mxu0 0
    %105 = vmatpush1.bf16.msra.mxu0 0
    %106 = vmatprep.subr.bf16.mxu0 0
    %107 = vmatpush1.bf16.msra.mxu0 0
    %108 = vmatprep.subr.bf16.mxu0 0
    %109 = vmatpush1.bf16.msra.mxu0 0
    %110 = vmatprep.subr.bf16.mxu0 0
    %111 = vmatpush1.bf16.msra.mxu0 %v94
    %112 = vmatprep.subr.bf16.mxu0 0
    %113 = vmatpush2.bf16.msra.mxu0 0
    %114 = vmatprep.subr.bf16.mxu0 0
    %115 = vmatpush2.bf16.msra.mxu0 0
    %116 = vmatprep.subr.bf16.mxu0 0
    %117 = vmatpush2.bf16.msra.mxu0 0
    %118 = vmatprep.subr.bf16.mxu0 0
    %119 = vmatpush2.bf16.msra.mxu0 0
    %120 = vmatprep.subr.bf16.mxu0 0
    %121 = vmatpush2.bf16.msra.mxu0 0
    %122 = vmatprep.subr.bf16.mxu0 0
    %123 = vmatpush2.bf16.msra.mxu0 0
    %124 = vmatprep.subr.bf16.mxu0 0
    %125 = vmatpush2.bf16.msra.mxu0 0
    %126 = vmatprep.subr.bf16.mxu0 0
    %127 = vmatpush2.bf16.msra.mxu0 0
    %128 = vmatprep.mubr.bf16.mxu0 0
    %129 = vmatmul.mubr.bf16.gmra.mxu0 %v72
    %v130 = vpop.f32.mrf.mxu0
    %v131 = vadd.f32 %v68, %v130
    %v132 = vpop.f32.mrf.mxu0
    %v133 = vpop.f32.mrf.mxu0
    %v134 = vadd.f32 %v68, %v133
    %v135 = vpop.f32.mrf.mxu0
    %136 = vmatprep.mubr.bf16.mxu0 0
    %137 = vmatmul.mubr.bf16.gmra.mxu0 %v75
    %v138 = vpop.f32.mrf.mxu0
    %v139 = vadd.f32 %v68, %v138
    %v140 = vpop.f32.mrf.mxu0
    %v141 = vpop.f32.mrf.mxu0
    %v142 = vadd.f32 %v68, %v141
    %v143 = vpop.f32.mrf.mxu0
    %144 = vmatprep.mubr.bf16.mxu0 0
    %145 = vmatmul.mubr.bf16.gmra.mxu0 %v78
    %v146 = vpop.f32.mrf.mxu0
    %v147 = vadd.f32 %v68, %v146
    %v148 = vpop.f32.mrf.mxu0
    %v149 = vpop.f32.mrf.mxu0
    %v150 = vadd.f32 %v68, %v149
    %v151 = vpop.f32.mrf.mxu0
    %152 = vmatprep.mubr.bf16.mxu0 0
    %153 = vmatmul.mubr.bf16.gmra.mxu0 %v81
    %v154 = vpop.f32.mrf.mxu0
    %v155 = vadd.f32 %v68, %v154
    %v156 = vpop.f32.mrf.mxu0
    %v157 = vpop.f32.mrf.mxu0
    %v158 = vadd.f32 %v68, %v157
    %v159 = vpop.f32.mrf.mxu0
    %160 = vmatprep.mubr.bf16.mxu0 0
    %161 = vmatmul.mubr.bf16.gmra.mxu0 %v84
    %v162 = vpop.f32.mrf.mxu0
    %v163 = vadd.f32 %v68, %v162
    %v164 = vpop.f32.mrf.mxu0
    %v165 = vpop.f32.mrf.mxu0
    %v166 = vadd.f32 %v68, %v165
    %v167 = vpop.f32.mrf.mxu0
    %168 = vmatprep.mubr.bf16.mxu0 0
    %169 = vmatmul.mubr.bf16.gmra.mxu0 %v87
    %v170 = vpop.f32.mrf.mxu0
    %v171 = vadd.f32 %v68, %v170
    %v172 = vpop.f32.mrf.mxu0
    %v173 = vpop.f32.mrf.mxu0
    %v174 = vadd.f32 %v68, %v173
    %v175 = vpop.f32.mrf.mxu0
    %176 = vmatprep.mubr.bf16.mxu0 0
    %177 = vmatmul.mubr.bf16.gmra.mxu0 %v90
    %v178 = vpop.f32.mrf.mxu0
    %v179 = vadd.f32 %v68, %v178
    %v180 = vpop.f32.mrf.mxu0
    %v181 = vpop.f32.mrf.mxu0
    %v182 = vpop.f32.mrf.mxu0
    %183 = vdwg.mxu0
    %vm184 = vcmp.gt.f32.partialorder %v131, 0.0
    %vm185 = vcmp.gt.f32.partialorder %v134, 0.0
    %vm186 = vcmp.gt.f32.partialorder %v139, 0.0
    %vm187 = vcmp.gt.f32.partialorder %v142, 0.0
    %vm188 = vcmp.gt.f32.partialorder %v147, 0.0
    %vm189 = vcmp.gt.f32.partialorder %v150, 0.0
    %vm190 = vcmp.gt.f32.partialorder %v155, 0.0
    %vm191 = vcmp.gt.f32.partialorder %v158, 0.0
    %vm192 = vcmp.gt.f32.partialorder %v163, 0.0
    %vm193 = vcmp.gt.f32.partialorder %v166, 0.0
    %vm194 = vcmp.gt.f32.partialorder %v171, 0.0
    %vm195 = vcmp.gt.f32.partialorder %v174, 0.0
    %vm196 = vcmp.gt.f32.partialorder %v179, 0.0
    %v197 = vmul.f32 %v131, 0.01
    %v198 = vmul.f32 %v134, 0.01
    %v199 = vmul.f32 %v139, 0.01
    %v200 = vmul.f32 %v142, 0.01
    %v201 = vmul.f32 %v147, 0.01
    %v202 = vmul.f32 %v150, 0.01
    %v203 = vmul.f32 %v155, 0.01
    %v204 = vmul.f32 %v158, 0.01
    %v205 = vmul.f32 %v163, 0.01
    %v206 = vmul.f32 %v166, 0.01
    %v207 = vmul.f32 %v171, 0.01
    %v208 = vmul.f32 %v174, 0.01
    %v209 = vmul.f32 %v179, 0.01
    %v210 = vsel %vm184, %v131, %v197
    %v211 = vsel %vm185, %v134, %v198
    %v212 = vsel %vm186, %v139, %v199
    %v213 = vsel %vm187, %v142, %v200
    %v214 = vsel %vm188, %v147, %v201
    %v215 = vsel %vm189, %v150, %v202
    %v216 = vsel %vm190, %v155, %v203
    %v217 = vsel %vm191, %v158, %v204
    %v218 = vsel %vm192, %v163, %v205
    %v219 = vsel %vm193, %v166, %v206
    %v220 = vsel %vm194, %v171, %v207
    %v221 = vsel %vm195, %v174, %v208
    %v222 = vsel %vm196, %v179, %v209
    %v223 = vpack.c.bf16 %v211, %v210
    %v224 = vpack.c.bf16 %v213, %v212
    %v225 = vpack.c.bf16 %v215, %v214
    %v226 = vpack.c.bf16 %v217, %v216
    %v227 = vpack.c.bf16 %v219, %v218
    %v228 = vpack.c.bf16 %v221, %v220
    %v229 = vpack.c.bf16 %v222, %v222
    %v230 = vld [vmem:[%s3] sm:$0xf]
    %v231 = vld [vmem:[%s3 + $0x4] sm:$0xf]
    %v232 = vld [vmem:[%s3 + $0x8] sm:$0xf]
    %v233 = vld [vmem:[%s3 + $0xc] sm:$0xf]
    %v234 = vld [vmem:[%s3 + $0x10] sm:$0xf]
    %v235 = vld [vmem:[%s3 + $0x14] sm:$0xf]
    %v236 = vld [vmem:[%s3 + $0x18] sm:$0xf]
    %v237 = vld [vmem:[%s3 + $0x1c] sm:$0xf]
    %v238 = vld [vmem:[%s3 + $0x20] sm:$0xf]
    %v239 = vld [vmem:[%s3 + $0x24] sm:$0xf]
    %v240 = vld [vmem:[%s3 + $0x28] sm:$0xf]
    %v241 = vld [vmem:[%s3 + $0x2c] sm:$0xf]
    %v242 = vld [vmem:[%s3 + $0x30] sm:$0xf]
    %v243 = vld [vmem:[%s3 + $0x34] sm:$0xf]
    %v244 = vld [vmem:[%s3 + $0x38] sm:$0xf]
    %v245 = vld [vmem:[%s3 + $0x3c] sm:$0xf]
    %v246 = vld [vmem:[%s4] sm:$0x1]
    %v248 = vlaneseq
    %v249 = vshrl.u32 %v248, 7
    %v250 = vsub.s32 0, %v249
    %v251 = vrot.slane %v246, %v250
    %v269 = vunpack.c.l.b16 %v230
    %v270 = vunpack.c.l.b16 %v231
    %v271 = vunpack.c.l.b16 %v232
    %v272 = vunpack.c.l.b16 %v233
    %v273 = vunpack.c.l.b16 %v234
    %v274 = vunpack.c.l.b16 %v235
    %v275 = vunpack.c.l.b16 %v236
    %v276 = vunpack.c.l.b16 %v237
    %v277 = vunpack.c.l.b16 %v238
    %v278 = vunpack.c.l.b16 %v239
    %v279 = vunpack.c.l.b16 %v240
    %v280 = vunpack.c.l.b16 %v241
    %v281 = vunpack.c.l.b16 %v242
    %v282 = vunpack.c.l.b16 %v243
    %v283 = vunpack.c.l.b16 %v244
    %v284 = vunpack.c.l.b16 %v245
    %v285 = vpack.c.b16 %v270, %v269
    %v286 = vpack.c.b16 %v272, %v271
    %v287 = vpack.c.b16 %v274, %v273
    %v288 = vpack.c.b16 %v276, %v275
    %v289 = vpack.c.b16 %v278, %v277
    %v290 = vpack.c.b16 %v280, %v279
    %v291 = vpack.c.b16 %v282, %v281
    %v292 = vpack.c.b16 %v284, %v283
    %301 = vmatprep.subr.bf16.mxu0 0
    %302 = vmatpush1.bf16.msra.mxu0 %v292
    %303 = vmatprep.subr.bf16.mxu0 0
    %304 = vmatpush1.bf16.msra.mxu0 %v291
    %305 = vmatprep.subr.bf16.mxu0 0
    %306 = vmatpush1.bf16.msra.mxu0 %v290
    %307 = vmatprep.subr.bf16.mxu0 0
    %308 = vmatpush1.bf16.msra.mxu0 %v289
    %309 = vmatprep.subr.bf16.mxu0 0
    %310 = vmatpush1.bf16.msra.mxu0 %v288
    %311 = vmatprep.subr.bf16.mxu0 0
    %312 = vmatpush1.bf16.msra.mxu0 %v287
    %313 = vmatprep.subr.bf16.mxu0 0
    %314 = vmatpush1.bf16.msra.mxu0 %v286
    %315 = vmatprep.subr.bf16.mxu0 0
    %316 = vmatpush1.bf16.msra.mxu0 %v285
    %317 = vmatprep.subr.bf16.mxu0 0
    %318 = vmatpush2.bf16.msra.mxu0 0
    %319 = vmatprep.subr.bf16.mxu0 0
    %320 = vmatpush2.bf16.msra.mxu0 0
    %321 = vmatprep.subr.bf16.mxu0 0
    %322 = vmatpush2.bf16.msra.mxu0 0
    %323 = vmatprep.subr.bf16.mxu0 0
    %324 = vmatpush2.bf16.msra.mxu0 0
    %325 = vmatprep.subr.bf16.mxu0 0
    %326 = vmatpush2.bf16.msra.mxu0 0
    %327 = vmatprep.subr.bf16.mxu0 0
    %328 = vmatpush2.bf16.msra.mxu0 0
    %329 = vmatprep.subr.bf16.mxu0 0
    %330 = vmatpush2.bf16.msra.mxu0 0
    %331 = vmatprep.subr.bf16.mxu0 0
    %332 = vmatpush2.bf16.msra.mxu0 0
    %333 = vmatprep.mubr.bf16.mxu0 0
    %334 = vmatmul.mubr.bf16.gmra.mxu0 %v223
    %v335 = vpop.f32.mrf.mxu0
    %v336 = vadd.f32 %v251, %v335
    %v337 = vpop.f32.mrf.mxu0
    %v338 = vpop.f32.mrf.mxu0
    %v339 = vadd.f32 %v251, %v338
    %v340 = vpop.f32.mrf.mxu0
    %341 = vmatprep.mubr.bf16.mxu0 0
    %342 = vmatmul.mubr.bf16.gmra.mxu0 %v224
    %v343 = vpop.f32.mrf.mxu0
    %v344 = vadd.f32 %v251, %v343
    %v345 = vpop.f32.mrf.mxu0
    %v346 = vpop.f32.mrf.mxu0
    %v347 = vadd.f32 %v251, %v346
    %v348 = vpop.f32.mrf.mxu0
    %349 = vmatprep.mubr.bf16.mxu0 0
    %350 = vmatmul.mubr.bf16.gmra.mxu0 %v225
    %v351 = vpop.f32.mrf.mxu0
    %v352 = vadd.f32 %v251, %v351
    %v353 = vpop.f32.mrf.mxu0
    %v354 = vpop.f32.mrf.mxu0
    %v355 = vadd.f32 %v251, %v354
    %v356 = vpop.f32.mrf.mxu0
    %357 = vmatprep.mubr.bf16.mxu0 0
    %358 = vmatmul.mubr.bf16.gmra.mxu0 %v226
    %v359 = vpop.f32.mrf.mxu0
    %v360 = vadd.f32 %v251, %v359
    %v361 = vpop.f32.mrf.mxu0
    %v362 = vpop.f32.mrf.mxu0
    %v363 = vadd.f32 %v251, %v362
    %v364 = vpop.f32.mrf.mxu0
    %365 = vmatprep.mubr.bf16.mxu0 0
    %366 = vmatmul.mubr.bf16.gmra.mxu0 %v227
    %v367 = vpop.f32.mrf.mxu0
    %v368 = vadd.f32 %v251, %v367
    %v369 = vpop.f32.mrf.mxu0
    %v370 = vpop.f32.mrf.mxu0
    %v371 = vadd.f32 %v251, %v370
    %v372 = vpop.f32.mrf.mxu0
    %373 = vmatprep.mubr.bf16.mxu0 0
    %374 = vmatmul.mubr.bf16.gmra.mxu0 %v228
    %v375 = vpop.f32.mrf.mxu0
    %v376 = vadd.f32 %v251, %v375
    %v377 = vpop.f32.mrf.mxu0
    %v378 = vpop.f32.mrf.mxu0
    %v379 = vadd.f32 %v251, %v378
    %v380 = vpop.f32.mrf.mxu0
    %381 = vmatprep.mubr.bf16.mxu0 0
    %382 = vmatmul.mubr.bf16.gmra.mxu0 %v229
    %v383 = vpop.f32.mrf.mxu0
    %v384 = vadd.f32 %v251, %v383
    %v385 = vpop.f32.mrf.mxu0
    %v386 = vpop.f32.mrf.mxu0
    %v387 = vpop.f32.mrf.mxu0
    %388 = vdwg.mxu0
    %vm389 = vcmp.gt.f32.partialorder %v336, 0.0
    %vm390 = vcmp.gt.f32.partialorder %v339, 0.0
    %vm391 = vcmp.gt.f32.partialorder %v344, 0.0
    %vm392 = vcmp.gt.f32.partialorder %v347, 0.0
    %vm393 = vcmp.gt.f32.partialorder %v352, 0.0
    %vm394 = vcmp.gt.f32.partialorder %v355, 0.0
    %vm395 = vcmp.gt.f32.partialorder %v360, 0.0
    %vm396 = vcmp.gt.f32.partialorder %v363, 0.0
    %vm397 = vcmp.gt.f32.partialorder %v368, 0.0
    %vm398 = vcmp.gt.f32.partialorder %v371, 0.0
    %vm399 = vcmp.gt.f32.partialorder %v376, 0.0
    %vm400 = vcmp.gt.f32.partialorder %v379, 0.0
    %vm401 = vcmp.gt.f32.partialorder %v384, 0.0
    %v402 = vmul.f32 %v336, 0.01
    %v403 = vmul.f32 %v339, 0.01
    %v404 = vmul.f32 %v344, 0.01
    %v405 = vmul.f32 %v347, 0.01
    %v406 = vmul.f32 %v352, 0.01
    %v407 = vmul.f32 %v355, 0.01
    %v408 = vmul.f32 %v360, 0.01
    %v409 = vmul.f32 %v363, 0.01
    %v410 = vmul.f32 %v368, 0.01
    %v411 = vmul.f32 %v371, 0.01
    %v412 = vmul.f32 %v376, 0.01
    %v413 = vmul.f32 %v379, 0.01
    %v414 = vmul.f32 %v384, 0.01
    %v415 = vsel %vm389, %v336, %v402
    %v416 = vsel %vm390, %v339, %v403
    %v417 = vsel %vm391, %v344, %v404
    %v418 = vsel %vm392, %v347, %v405
    %v419 = vsel %vm393, %v352, %v406
    %v420 = vsel %vm394, %v355, %v407
    %v421 = vsel %vm395, %v360, %v408
    %v422 = vsel %vm396, %v363, %v409
    %v423 = vsel %vm397, %v368, %v410
    %v424 = vsel %vm398, %v371, %v411
    %v425 = vsel %vm399, %v376, %v412
    %v426 = vsel %vm400, %v379, %v413
    %v427 = vsel %vm401, %v384, %v414
    %v428 = vpack.c.bf16 %v416, %v415
    %v429 = vpack.c.bf16 %v418, %v417
    %v430 = vpack.c.bf16 %v420, %v419
    %v431 = vpack.c.bf16 %v422, %v421
    %v432 = vpack.c.bf16 %v424, %v423
    %v433 = vpack.c.bf16 %v426, %v425
    %v434 = vpack.c.bf16 %v427, %v427
    %v435 = vld [vmem:[#allocation2] sm:$0xf]
    %v436 = vld [vmem:[#allocation2 + $0x4] sm:$0xf]
    %v437 = vld [vmem:[#allocation2 + $0x8] sm:$0xf]
    %v438 = vld [vmem:[#allocation2 + $0xc] sm:$0xf]
    %v439 = vld [vmem:[#allocation2 + $0x10] sm:$0xf]
    %v440 = vld [vmem:[#allocation2 + $0x14] sm:$0xf]
    %v441 = vld [vmem:[#allocation2 + $0x18] sm:$0xf]
    %v442 = vld [vmem:[#allocation2 + $0x1c] sm:$0xf]
    %v443 = vld [vmem:[#allocation2 + $0x20] sm:$0xf]
    %v444 = vld [vmem:[#allocation2 + $0x24] sm:$0xf]
    %v445 = vld [vmem:[#allocation2 + $0x28] sm:$0xf]
    %v446 = vld [vmem:[#allocation2 + $0x2c] sm:$0xf]
    %v447 = vld [vmem:[#allocation2 + $0x30] sm:$0xf]
    %v448 = vld [vmem:[#allocation2 + $0x34] sm:$0xf]
    %v449 = vld [vmem:[#allocation2 + $0x38] sm:$0xf]
    %v450 = vld [vmem:[#allocation2 + $0x3c] sm:$0xf]
    %v451 = vld [vmem:[%s6] sm:$0x1]
    %v453 = vlaneseq
    %v454 = vshrl.u32 %v453, 7
    %v455 = vsub.s32 0, %v454
    %v456 = vrot.slane %v451, %v455
    %v474 = vunpack.c.l.b16 %v435
    %v475 = vunpack.c.l.b16 %v436
    %v476 = vunpack.c.l.b16 %v437
    %v477 = vunpack.c.l.b16 %v438
    %v478 = vunpack.c.l.b16 %v439
    %v479 = vunpack.c.l.b16 %v440
    %v480 = vunpack.c.l.b16 %v441
    %v481 = vunpack.c.l.b16 %v442
    %v482 = vunpack.c.l.b16 %v443
    %v483 = vunpack.c.l.b16 %v444
    %v484 = vunpack.c.l.b16 %v445
    %v485 = vunpack.c.l.b16 %v446
    %v486 = vunpack.c.l.b16 %v447
    %v487 = vunpack.c.l.b16 %v448
    %v488 = vunpack.c.l.b16 %v449
    %v489 = vunpack.c.l.b16 %v450
    %v490 = vpack.c.b16 %v475, %v474
    %v491 = vpack.c.b16 %v477, %v476
    %v492 = vpack.c.b16 %v479, %v478
    %v493 = vpack.c.b16 %v481, %v480
    %v494 = vpack.c.b16 %v483, %v482
    %v495 = vpack.c.b16 %v485, %v484
    %v496 = vpack.c.b16 %v487, %v486
    %v497 = vpack.c.b16 %v489, %v488
    %506 = vmatprep.subr.bf16.mxu0 0
    %507 = vmatpush1.bf16.msra.mxu0 %v497
    %508 = vmatprep.subr.bf16.mxu0 0
    %509 = vmatpush1.bf16.msra.mxu0 %v496
    %510 = vmatprep.subr.bf16.mxu0 0
    %511 = vmatpush1.bf16.msra.mxu0 %v495
    %512 = vmatprep.subr.bf16.mxu0 0
    %513 = vmatpush1.bf16.msra.mxu0 %v494
    %514 = vmatprep.subr.bf16.mxu0 0
    %515 = vmatpush1.bf16.msra.mxu0 %v493
    %516 = vmatprep.subr.bf16.mxu0 0
    %517 = vmatpush1.bf16.msra.mxu0 %v492
    %518 = vmatprep.subr.bf16.mxu0 0
    %519 = vmatpush1.bf16.msra.mxu0 %v491
    %520 = vmatprep.subr.bf16.mxu0 0
    %521 = vmatpush1.bf16.msra.mxu0 %v490
    %522 = vmatprep.subr.bf16.mxu0 0
    %523 = vmatpush2.bf16.msra.mxu0 0
    %524 = vmatprep.subr.bf16.mxu0 0
    %525 = vmatpush2.bf16.msra.mxu0 0
    %526 = vmatprep.subr.bf16.mxu0 0
    %527 = vmatpush2.bf16.msra.mxu0 0
    %528 = vmatprep.subr.bf16.mxu0 0
    %529 = vmatpush2.bf16.msra.mxu0 0
    %530 = vmatprep.subr.bf16.mxu0 0
    %531 = vmatpush2.bf16.msra.mxu0 0
    %532 = vmatprep.subr.bf16.mxu0 0
    %533 = vmatpush2.bf16.msra.mxu0 0
    %534 = vmatprep.subr.bf16.mxu0 0
    %535 = vmatpush2.bf16.msra.mxu0 0
    %536 = vmatprep.subr.bf16.mxu0 0
    %537 = vmatpush2.bf16.msra.mxu0 0
    %538 = vmatprep.mubr.bf16.mxu0 0
    %539 = vmatmul.mubr.bf16.gmra.mxu0 %v428
    %v540 = vpop.f32.mrf.mxu0
    %v541 = vadd.f32 %v456, %v540
    %v542 = vpop.f32.mrf.mxu0
    %v543 = vpop.f32.mrf.mxu0
    %v544 = vadd.f32 %v456, %v543
    %v545 = vpop.f32.mrf.mxu0
    %546 = vmatprep.mubr.bf16.mxu0 0
    %547 = vmatmul.mubr.bf16.gmra.mxu0 %v429
    %v548 = vpop.f32.mrf.mxu0
    %v549 = vadd.f32 %v456, %v548
    %v550 = vpop.f32.mrf.mxu0
    %v551 = vpop.f32.mrf.mxu0
    %v552 = vadd.f32 %v456, %v551
    %v553 = vpop.f32.mrf.mxu0
    %554 = vmatprep.mubr.bf16.mxu0 0
    %555 = vmatmul.mubr.bf16.gmra.mxu0 %v430
    %v556 = vpop.f32.mrf.mxu0
    %v557 = vadd.f32 %v456, %v556
    %v558 = vpop.f32.mrf.mxu0
    %v559 = vpop.f32.mrf.mxu0
    %v560 = vadd.f32 %v456, %v559
    %v561 = vpop.f32.mrf.mxu0
    %562 = vmatprep.mubr.bf16.mxu0 0
    %563 = vmatmul.mubr.bf16.gmra.mxu0 %v431
    %v564 = vpop.f32.mrf.mxu0
    %v565 = vadd.f32 %v456, %v564
    %v566 = vpop.f32.mrf.mxu0
    %v567 = vpop.f32.mrf.mxu0
    %v568 = vadd.f32 %v456, %v567
    %v569 = vpop.f32.mrf.mxu0
    %570 = vmatprep.mubr.bf16.mxu0 0
    %571 = vmatmul.mubr.bf16.gmra.mxu0 %v432
    %v572 = vpop.f32.mrf.mxu0
    %v573 = vadd.f32 %v456, %v572
    %v574 = vpop.f32.mrf.mxu0
    %v575 = vpop.f32.mrf.mxu0
    %v576 = vadd.f32 %v456, %v575
    %v577 = vpop.f32.mrf.mxu0
    %578 = vmatprep.mubr.bf16.mxu0 0
    %579 = vmatmul.mubr.bf16.gmra.mxu0 %v433
    %v580 = vpop.f32.mrf.mxu0
    %v581 = vadd.f32 %v456, %v580
    %v582 = vpop.f32.mrf.mxu0
    %v583 = vpop.f32.mrf.mxu0
    %v584 = vadd.f32 %v456, %v583
    %v585 = vpop.f32.mrf.mxu0
    %586 = vmatprep.mubr.bf16.mxu0 0
    %587 = vmatmul.mubr.bf16.gmra.mxu0 %v434
    %v588 = vpop.f32.mrf.mxu0
    %v589 = vadd.f32 %v456, %v588
    %v590 = vpop.f32.mrf.mxu0
    %v591 = vpop.f32.mrf.mxu0
    %v592 = vpop.f32.mrf.mxu0
    %593 = vdwg.mxu0
    %594 = vst [vmem:[#allocation5] sm:$0xff] %v541
    %595 = vst [vmem:[#allocation5 + $0x8] sm:$0xff] %v544
    %596 = vst [vmem:[#allocation5 + $0x10] sm:$0xff] %v549
    %597 = vst [vmem:[#allocation5 + $0x18] sm:$0xff] %v552
    %598 = vst [vmem:[#allocation5 + $0x20] sm:$0xff] %v557
    %599 = vst [vmem:[#allocation5 + $0x28] sm:$0xff] %v560
    %600 = vst [vmem:[#allocation5 + $0x30] sm:$0xff] %v565
    %601 = vst [vmem:[#allocation5 + $0x38] sm:$0xff] %v568
    %602 = vst [vmem:[#allocation5 + $0x40] sm:$0xff] %v573
    %603 = vst [vmem:[#allocation5 + $0x48] sm:$0xff] %v576
    %604 = vst [vmem:[#allocation5 + $0x50] sm:$0xff] %v581
    %605 = vst [vmem:[#allocation5 + $0x58] sm:$0xff] %v584
    %606 = vst [vmem:[#allocation5 + $0x60] sm:$0xff] %v589
    // Predicated region
    $region34: #{tpu_custom_call.1} parent=1 // pred_check
      _
    $region35: #{tpu_custom_call.1} parent=1 // pred_check_branch
      %608 = sbr.rel (0) target = $region37
    $region36: #{tpu_custom_call.1} parent=1 // pred_region
      %s610 = ssub.s32 1664, 1664
      %611 = vsyncadd [#allocation4], %s610
      %s612 = sshll.u32 [#allocation5], 4
      %s613 = int_to_ptr.vmem [resolvable:$true] %s612
      %618 = dma.vmem_to_hbm [thread:$0]  %s613, 1664, %s7, [#allocation4], 128, 128, 8
    $region37: #{tpu_custom_call.1} parent=1 // pred_fallthru
      _
    // Predicated region
    $region38: #{tpu_custom_call.1} parent=1 // pred_check
      _
    $region39: #{tpu_custom_call.1} parent=1 // pred_check_branch
      %620 = sbr.rel (0) target = $region41
    $region40: #{tpu_custom_call.1} parent=1 // pred_region
      %621 = dma.done [#allocation4], 1664
    $region41: #{tpu_custom_call.1} parent=1 // pred_fallthru
      _
    %622 = vsyncpa [#allocation3], 1
    %623 = vsyncpa [#allocation4], 1

</llo_original>
